<compile_context>
chip_gen: v7x
topology: tpu7x:2x2x1
jax: 0.10.0
libtpu: 0.0.40
codegen_flags: <defaults>
</compile_context>

<pallas_src>
import functools

import jax
import jax.numpy as jnp
from jax import lax
from jax.experimental import pallas as pl
from jax.experimental.pallas import tpu as pltpu

LANES = 128
ACC_ROWS = 8            # one f32 vreg of accumulator rows per core
MAX_TILE_ROWS = 2048    # 2048*128*4B = 1 MiB per input tile (~4 MiB double-buffered)


def _sublane_multiple(dtype) -> int:
    # Minimum sublane granularity for packed dtypes: 8 (32-bit), 16 (16-bit),
    # 32 (8-bit) — keeps block shapes legal for sub-32-bit inputs.
    itemsize = jnp.dtype(dtype).itemsize
    return max(8, 32 // max(1, itemsize))


def _height_loss_kernel(pred_ref, true_ref, out_ref, *, beta, is_height_weight,
                        tile_rows, steps, slab_rows, needs_mask):
    c = pl.program_id(0)
    i = pl.program_id(1)

    # out_ref is this core's resident (8, 128) partial-sum block; it stays in
    # VMEM across the sequential ("arbitrary") step axis.
    @pl.when(i == 0)
    def _():
        out_ref[...] = jnp.zeros_like(out_ref)

    p = pred_ref[...].astype(jnp.float32)
    t = true_ref[...].astype(jnp.float32)
    d = p - t
    ad = jnp.abs(d)

    # smooth_l1_loss, reduction='none' (beta folded into compile-time constants).
    if beta == 0.0:
        loss = ad                                   # beta == 0 -> pure L1
    else:
        loss = jnp.where(ad < beta, (0.5 / beta) * d * d, ad - 0.5 * beta)

    if is_height_weight:
        # weight = 1 (t<10), 2 (10<=t<20), 3 (20<=t<30), 4 (t>=30), 1 for t<0.
        # floor/clip form trims VPU ops vs three compare+cast+add; thresholds
        # 10/20/30 multiply to exactly 1.0/2.0/3.0 in f32 (and bf16), and no
        # representable value below a threshold crosses it after the multiply.
        w = 1.0 + jnp.clip(jnp.floor(t * jnp.float32(0.1)), 0.0, 3.0)
        loss = loss * w

    if needs_mask:
        # Zero rows past the end of the (slab_rows, 128) slab: the last
        # in-bounds block may be partial (its overhang rows hold stale VMEM),
        # and fully-OOB blocks were clamped in the index_map to re-read the
        # last block, so their contribution must be dropped entirely.
        blk = c * steps + i
        nvalid = slab_rows - blk * tile_rows        # may be <= 0 or > tile_rows
        row_ids = lax.broadcasted_iota(jnp.int32, (tile_rows, 1), 0)
        loss = jnp.where(row_ids < nvalid, loss, 0.0)

    # Fold the (tile_rows, 128) tile onto the (8, 128) accumulator: pure VPU
    # adds, no cross-lane reduce inside the hot loop.
    out_ref[...] += loss.reshape(tile_rows // ACC_ROWS, ACC_ROWS, LANES).sum(axis=0)


def height_loss(y_pred, y_true, *, beta=1.0, is_height_weight=False,
                max_tile_rows=MAX_TILE_ROWS):
    """Pallas equivalent of HeightLoss(beta, is_height_weight)(y_pred, y_true)."""
    assert y_pred.shape == y_true.shape
    n = y_pred.size
    assert n > 0

    smult = max(_sublane_multiple(y_pred.dtype), _sublane_multiple(y_true.dtype))

    # Lane-dense slab in the original dtype.  Only pad to lane/sublane
    # granularity (< smult*128 elements) — zero padding contributes exactly 0
    # loss (pred == true == 0).  No bulk pad to tile/core granularity.
    rows = pl.cdiv(n, LANES)
    slab_rows = pl.cdiv(rows, smult) * smult
    slab_n = slab_rows * LANES

    def to_slab(x):
        flat = jnp.ravel(x)
        if slab_n != n:
            flat = jnp.pad(flat, (0, slab_n - n))
        return flat.reshape(slab_rows, LANES)

    pred2d = to_slab(y_pred)
    true2d = to_slab(y_true)

    # Row tile: as large as possible (multiple of the sublane packing), capped.
    tile_rows = max(smult, (min(max_tile_rows, slab_rows) // smult) * smult)
    nblocks = pl.cdiv(slab_rows, tile_rows)

    # Leading "parallel" axis: lets the runtime shard the two halves across
    # TensorCores on multi-TC chips (v7x); serial and harmless on 1-TC chips.
    num_cores = 2 if nblocks >= 2 else 1
    steps = pl.cdiv(nblocks, num_cores)
    needs_mask = (num_cores * steps * tile_rows) != slab_rows

    def in_idx(c, i):
        # Clamp fully out-of-bounds blocks onto the last valid block; their
        # contribution is zeroed by the in-kernel row mask.
        return (jnp.minimum(c * steps + i, nblocks - 1), 0)

    kernel = functools.partial(
        _height_loss_kernel,
        beta=float(beta),
        is_height_weight=bool(is_height_weight),
        tile_rows=tile_rows,
        steps=steps,
        slab_rows=slab_rows,
        needs_mask=needs_mask,
    )

    flops_per_elem = 8 + (6 if is_height_weight else 0)
    cost = pl.CostEstimate(
        flops=flops_per_elem * slab_n,
        transcendentals=0,
        bytes_accessed=(slab_n * (pred2d.dtype.itemsize + true2d.dtype.itemsize)
                        + num_cores * ACC_ROWS * LANES * 4),
    )

    partials = pl.pallas_call(
        kernel,
        out_shape=jax.ShapeDtypeStruct((num_cores * ACC_ROWS, LANES), jnp.float32),
        grid_spec=pltpu.PrefetchScalarGridSpec(
            num_scalar_prefetch=0,
            grid=(num_cores, steps),
            in_specs=[
                pl.BlockSpec((tile_rows, LANES), in_idx),
                pl.BlockSpec((tile_rows, LANES), in_idx),
            ],
            out_specs=pl.BlockSpec((ACC_ROWS, LANES), lambda c, i: (c, 0)),
        ),
        compiler_params=pltpu.CompilerParams(
            dimension_semantics=("parallel", "arbitrary"),
            vmem_limit_bytes=32 * 1024 * 1024,
            allow_input_fusion=[True, True],
        ),
        cost_estimate=cost,
    )(pred2d, true2d)

    # Tiny final reduce (<= 2*8*128 values) + mean normalization.
    return jnp.sum(partials) / jnp.float32(n)


def _height_loss_ref(y_pred, y_true, *, beta=1.0, is_height_weight=False):
    """Pure-JAX reference mirroring the PyTorch module exactly."""
    p = y_pred.astype(jnp.float32)
    t = y_true.astype(jnp.float32)
    d = p - t
    ad = jnp.abs(d)
    if beta == 0.0:
        loss = ad
    else:
        loss = jnp.where(ad < beta, 0.5 * d * d / beta, ad - 0.5 * beta)
    if is_height_weight:
        w = jnp.ones_like(t)
        w = jnp.where(t >= 10.0, 2.0, w)
        w = jnp.where(t >= 20.0, 3.0, w)
        w = jnp.where(t >= 30.0, 4.0, w)
        loss = loss * w
    return jnp.mean(loss)


if __name__ == "__main__":
    key = jax.random.PRNGKey(0)
    k1, k2, k3, k4, k5, k6 = jax.random.split(key, 6)

    def check(yp, yt, beta, is_hw, **kernel_kw):
        out = jax.block_until_ready(
            height_loss(yp, yt, beta=beta, is_height_weight=is_hw, **kernel_kw))
        ref = _height_loss_ref(yp, yt, beta=beta, is_height_weight=is_hw)
        return bool(jnp.allclose(out, ref, rtol=1e-4, atol=1e-5))

    results = []

    # Primary case: NCHW height map, batch=2, channels=4, spatial 16x16.
    shape = (2, 4, 16, 16)
    yp = jax.random.uniform(k1, shape, jnp.float32, minval=-5.0, maxval=40.0)
    yt = jax.random.uniform(k2, shape, jnp.float32, minval=-5.0, maxval=40.0)
    results.append(check(yp, yt, beta=1.0, is_hw=False))
    results.append(check(yp, yt, beta=1.0, is_hw=True))

    # Element count not a multiple of 128 (exercises the tiny lane/sublane pad).
    shape2 = (3, 5, 9, 11)
    yp2 = jax.random.uniform(k3, shape2, jnp.float32, minval=-5.0, maxval=40.0)
    yt2 = jax.random.uniform(k4, shape2, jnp.float32, minval=-5.0, maxval=40.0)
    results.append(check(yp2, yt2, beta=2.0, is_hw=True))

    # Multi-block / two-core / masked-tail path (forced small tile).
    shape3 = (2, 4, 32, 32)
    yp3 = jax.random.uniform(k5, shape3, jnp.float32, minval=-5.0, maxval=40.0)
    yt3 = jax.random.uniform(k6, shape3, jnp.float32, minval=-5.0, maxval=40.0)
    results.append(check(yp3, yt3, beta=1.0, is_hw=True, max_tile_rows=24))

    if all(results):
        print("KERNEL_OK")
</pallas_src>

<mosaic_0001>
module attributes {stable_mosaic.version = 11 : i64} {
  func.func @_height_loss_kernel(%arg0: i32, %arg1: i32, %arg2: memref<16x128xf32, #tpu.memory_space<vmem>>, %arg3: memref<16x128xf32, #tpu.memory_space<vmem>>, %arg4: memref<8x128xf32, #tpu.memory_space<vmem>>) attributes {dimension_semantics = [#tpu.dimension_semantics<parallel>, #tpu.dimension_semantics<arbitrary>], iteration_bounds = array<i64: 1, 1>, scalar_prefetch = 0 : i64, scratch_operands = 0 : i64, tpu.core_type = #tpu.core_type<tc>, window_params = [{transform_indices = @transform_0, window_bounds = array<i64: 16, 128>}, {transform_indices = @transform_1, window_bounds = array<i64: 16, 128>}, {transform_indices = @transform_2, window_bounds = array<i64: 8, 128>}]} {
    %c0_i32 = arith.constant 0 : i32
    %0 = arith.cmpi eq, %arg1, %c0_i32 : i32
    %1 = arith.extui %0 : i1 to i32
    %c0_i32_0 = arith.constant 0 : i32
    %2 = arith.cmpi ne, %1, %c0_i32_0 : i32
    scf.if %2 {
      %cst_11 = arith.constant 0.000000e+00 : f32
      %20 = vector.broadcast %cst_11 : f32 to vector<8x128xf32>
      %c0_12 = arith.constant 0 : index
      %c0_13 = arith.constant 0 : index
      %21 = vector.load %arg4[%c0_12, %c0_13] : memref<8x128xf32, #tpu.memory_space<vmem>>, vector<8x128xf32>
      tpu.vector_store %arg4[%c0_12, %c0_13], %20 {strides = array<i32>} : memref<8x128xf32, #tpu.memory_space<vmem>>, vector<8x128xf32>,
    } else {
    }
    %c0 = arith.constant 0 : index
    %c0_1 = arith.constant 0 : index
    %3 = vector.load %arg2[%c0, %c0_1] : memref<16x128xf32, #tpu.memory_space<vmem>>, vector<16x128xf32>
    %c0_2 = arith.constant 0 : index
    %c0_3 = arith.constant 0 : index
    %4 = vector.load %arg3[%c0_2, %c0_3] : memref<16x128xf32, #tpu.memory_space<vmem>>, vector<16x128xf32>
    %5 = arith.subf %3, %4 : vector<16x128xf32>
    %6 = math.absf %5 : vector<16x128xf32>
    %cst = arith.constant 1.000000e+00 : f32
    %7 = vector.broadcast %cst : f32 to vector<16x128xf32>
    %8 = arith.cmpf olt, %6, %7 : vector<16x128xf32>
    %cst_4 = arith.constant 5.000000e-01 : f32
    %9 = vector.broadcast %cst_4 : f32 to vector<16x128xf32>
    %10 = arith.mulf %9, %5 : vector<16x128xf32>
    %11 = arith.mulf %10, %5 : vector<16x128xf32>
    %cst_5 = arith.constant 5.000000e-01 : f32
    %12 = vector.broadcast %cst_5 : f32 to vector<16x128xf32>
    %13 = arith.subf %6, %12 : vector<16x128xf32>
    %14 = arith.select %8, %11, %13 : vector<16x128xi1>, vector<16x128xf32>
    %c0_6 = arith.constant 0 : index
    %c0_7 = arith.constant 0 : index
    %15 = vector.load %arg4[%c0_6, %c0_7] : memref<8x128xf32, #tpu.memory_space<vmem>>, vector<8x128xf32>
    %16 = vector.shape_cast %14 : vector<16x128xf32> to vector<2x8x128xf32>
    %cst_8 = arith.constant dense<0.000000e+00> : vector<8x128xf32>
    %17 = vector.multi_reduction <add>, %16, %cst_8 [0] : vector<2x8x128xf32> to vector<8x128xf32>
    %18 = arith.addf %15, %17 : vector<8x128xf32>
    %c0_9 = arith.constant 0 : index
    %c0_10 = arith.constant 0 : index
    %19 = vector.load %arg4[%c0_9, %c0_10] : memref<8x128xf32, #tpu.memory_space<vmem>>, vector<8x128xf32>
    tpu.vector_store %arg4[%c0_9, %c0_10], %18 {strides = array<i32>} : memref<8x128xf32, #tpu.memory_space<vmem>>, vector<8x128xf32>,
    return
  }
  func.func @transform_0(%arg0: i32, %arg1: i32) -> (i32, i32) {
    %c1_i32 = arith.constant 1 : i32
    %0 = arith.muli %arg0, %c1_i32 : i32
    %1 = arith.addi %0, %arg1 : i32
    %c0_i32 = arith.constant 0 : i32
    %2 = arith.minsi %1, %c0_i32 : i32
    %c0_i32_0 = arith.constant 0 : i32
    %c0_i32_1 = arith.constant 0 : i32
    return %2, %c0_i32_0 : i32, i32
  }
  func.func @transform_1(%arg0: i32, %arg1: i32) -> (i32, i32) {
    %c1_i32 = arith.constant 1 : i32
    %0 = arith.muli %arg0, %c1_i32 : i32
    %1 = arith.addi %0, %arg1 : i32
    %c0_i32 = arith.constant 0 : i32
    %2 = arith.minsi %1, %c0_i32 : i32
    %c0_i32_0 = arith.constant 0 : i32
    %c0_i32_1 = arith.constant 0 : i32
    return %2, %c0_i32_0 : i32, i32
  }
  func.func @transform_2(%arg0: i32, %arg1: i32) -> (i32, i32) {
    %c0_i32 = arith.constant 0 : i32
    %c0_i32_0 = arith.constant 0 : i32
    return %arg0, %c0_i32 : i32, i32
  }
}

</mosaic_0001>

<llo_original>
// kernel: tpu_custom_call.1
$region0: #{tpu_custom_call.1}
  #allocation0 [shape = 'u32[]', space=smem, size = 0x4, offset = 0x4, fixed_abs, tag = 'smem constant byte address 0x4 - core index']
  #allocation1 [shape = 'u32[144,128]{1,0:T(1,128)}', space=vmem, size = 0x12000, scoped, tag = 'internal scratch']
  %s0 = inlined_call_operand.hbm [shape: f32[16,128], index: 0, kind: input, shape index: {}]
  %s1 = inlined_call_operand.hbm [shape: f32[16,128], index: 1, kind: input, shape index: {}]
  %s2 = inlined_call_operand.hbm [shape: f32[8,128], index: 2, kind: output, shape index: {}]
  %s3 = sld [smem:[#allocation0]]
  $region30: #{tpu_custom_call.1} parent=0
    _
  %s5 = ssub.s32 1, %s3
  %s6 = scalar_select 0, %s5, %s3
  $region1: #{tpu_custom_call.1} parent=0
    #allocation2 [shape = 'u8[8192]{0}', space=vmem, size = 0x2000, scoped, tag = 'input window, operand 0, single buffered']
    #allocation3 [shape = 's32[1]{0}', space=sflag, size = 0x4, scoped, tag = 'scoped memory for tpu_custom_call.1']
    #allocation4 [shape = 's32[1]{0}', space=sflag, size = 0x4, scoped, tag = 'scoped memory for tpu_custom_call.1']
    #allocation5 [shape = 'u8[8192]{0}', space=vmem, size = 0x2000, scoped, tag = 'input window, operand 1, single buffered']
    #allocation6 [shape = 's32[1]{0}', space=sflag, size = 0x4, scoped, tag = 'scoped memory for tpu_custom_call.1']
    #allocation7 [shape = 'u8[4096]{0}', space=vmem, size = 0x1000, scoped, tag = 'output window, operand 0, single buffered']
    %7 = vsyncpa [#allocation3], 0
    %8 = vsyncpa [#allocation6], 0
    %9 = vsyncpa [#allocation4], 0
    // Predicated region
    $region2: #{tpu_custom_call.1} parent=1 // pred_check
      _
    $region3: #{tpu_custom_call.1} parent=1 // pred_check_branch
      %11 = sbr.rel (0) target = $region5
    $region4: #{tpu_custom_call.1} parent=1 // pred_region
      %s12 = sadd.s32 0, 0
      %p13 = scmp.lt.s32.totalorder %s12, 0
      %s14 = scalar_select %p13, %s12, 0
      %s15 = smul.u32 2, %s14
      %s17 = ssub.s32 256, 256
      %18 = vsyncadd [#allocation3], %s17
      %s19 = smul.addr %s15, 128
      %s20 = scalar_lea.hbm %s0, %s19
      %s21 = sshll.u32 [#allocation2], 4
      %s22 = int_to_ptr.vmem [resolvable:$true] %s21
      %27 = dma.hbm_to_vmem [thread:$0]  %s20, 256, %s22, [#allocation3], 128, 128, 8
    $region5: #{tpu_custom_call.1} parent=1 // pred_fallthru
      _
    // Predicated region
    $region6: #{tpu_custom_call.1} parent=1 // pred_check
      _
    $region7: #{tpu_custom_call.1} parent=1 // pred_check_branch
      %29 = sbr.rel (0) target = $region9
    $region8: #{tpu_custom_call.1} parent=1 // pred_region
      %s30 = sadd.s32 0, 0
      %p31 = scmp.lt.s32.totalorder %s30, 0
      %s32 = scalar_select %p31, %s30, 0
      %s33 = smul.u32 2, %s32
      %s35 = ssub.s32 256, 256
      %36 = vsyncadd [#allocation6], %s35
      %s37 = smul.addr %s33, 128
      %s38 = scalar_lea.hbm %s1, %s37
      %s39 = sshll.u32 [#allocation5], 4
      %s40 = int_to_ptr.vmem [resolvable:$true] %s39
      %45 = dma.hbm_to_vmem [thread:$0]  %s38, 256, %s40, [#allocation6], 128, 128, 8
    $region9: #{tpu_custom_call.1} parent=1 // pred_fallthru
      _
    // Predicated region
    $region10: #{tpu_custom_call.1} parent=1 // pred_check
      _
    $region11: #{tpu_custom_call.1} parent=1 // pred_check_branch
      %47 = sbr.rel (0) target = $region13
    $region12: #{tpu_custom_call.1} parent=1 // pred_region
      %48 = dma.done [#allocation3], 256
    $region13: #{tpu_custom_call.1} parent=1 // pred_fallthru
      _
    // Predicated region
    $region14: #{tpu_custom_call.1} parent=1 // pred_check
      _
    $region15: #{tpu_custom_call.1} parent=1 // pred_check_branch
      %50 = sbr.rel (0) target = $region17
    $region16: #{tpu_custom_call.1} parent=1 // pred_region
      %51 = dma.done [#allocation6], 256
    $region17: #{tpu_custom_call.1} parent=1 // pred_fallthru
      _
    %s52 = sadd.s32 0, 0
    %p53 = scmp.lt.s32.totalorder %s52, 0
    %s54 = scalar_select %p53, %s52, 0
    %s55 = smul.u32 2, %s54
    %s56 = sadd.s32 0, 0
    %p57 = scmp.lt.s32.totalorder %s56, 0
    %s58 = scalar_select %p57, %s56, 0
    %s59 = smul.u32 2, %s58
    %p60 = scmp.eq.s32.totalorder 0, 0
    // Predicated region
    $region18: #{tpu_custom_call.1} parent=1 // pred_check
      %p61 = pneg %p60
    $region19: #{tpu_custom_call.1} parent=1 // pred_check_branch
      %63 = sbr.rel (%p61) target = $region21
    $region20: #{tpu_custom_call.1} parent=1 // pred_region
      %64 = vst [vmem:[#allocation7] sm:$0xff] 0.0
    $region21: #{tpu_custom_call.1} parent=1 // pred_fallthru
      _
    %v65 = vld [vmem:[#allocation2] sm:$0xff]
    %v66 = vld [vmem:[#allocation2 + $0x8] sm:$0xff]
    %v67 = vld [vmem:[#allocation5] sm:$0xff]
    %v68 = vld [vmem:[#allocation5 + $0x8] sm:$0xff]
    %v69 = vsub.f32 %v65, %v67
    %v70 = vsub.f32 %v66, %v68
    %v71 = vand.u32 2147483647, %v69
    %v72 = vand.u32 2147483647, %v70
    %vm73 = vcmp.lt.f32.partialorder %v71, 1.0
    %vm74 = vcmp.lt.f32.partialorder %v72, 1.0
    %v75 = vmul.f32 %v69, 0.5
    %v76 = vmul.f32 %v70, 0.5
    %v77 = vmul.f32 %v75, %v69
    %v78 = vmul.f32 %v76, %v70
    %v79 = vsub.f32 %v71, 0.5
    %v80 = vsub.f32 %v72, 0.5
    %v81 = vsel %vm73, %v77, %v79
    %v82 = vsel %vm74, %v78, %v80
    %v83 = vld [vmem:[#allocation7] sm:$0xff]
    %v84 = vadd.f32 %v81, %v82
    %v85 = vadd.f32 %v83, %v84
    %86 = vst [vmem:[#allocation7] sm:$0xff] %v85
    // Predicated region
    $region22: #{tpu_custom_call.1} parent=1 // pred_check
      _
    $region23: #{tpu_custom_call.1} parent=1 // pred_check_branch
      %88 = sbr.rel (0) target = $region25
    $region24: #{tpu_custom_call.1} parent=1 // pred_region
      %s90 = ssub.s32 128, 128
      %91 = vsyncadd [#allocation4], %s90
      %s93 = sshll.u32 [#allocation7], 4
      %s94 = int_to_ptr.vmem [resolvable:$true] %s93
      %96 = dma.vmem_to_hbm [thread:$0]  %s94, 128, %s2, [#allocation4]
    $region25: #{tpu_custom_call.1} parent=1 // pred_fallthru
      _
    // Predicated region
    $region26: #{tpu_custom_call.1} parent=1 // pred_check
      _
    $region27: #{tpu_custom_call.1} parent=1 // pred_check_branch
      %98 = sbr.rel (0) target = $region29
    $region28: #{tpu_custom_call.1} parent=1 // pred_region
      %99 = dma.done [#allocation4], 128
    $region29: #{tpu_custom_call.1} parent=1 // pred_fallthru
      _
    %100 = vsyncpa [#allocation3], 1
    %101 = vsyncpa [#allocation6], 1
    %102 = vsyncpa [#allocation4], 1

</llo_original>
